<compile_context>
chip_gen: v5e
topology: v5e:2x2
jax: 0.10.0
libtpu: 0.0.40
codegen_flags: <defaults>
</compile_context>

<pallas_src>
import math

import jax
import jax.numpy as jnp
from jax import lax
from jax.experimental import pallas as pl
from jax.experimental.pallas import tpu as pltpu


def _pair(v):
    return (v, v) if isinstance(v, int) else tuple(v)


def _round_up(x, m):
    return (x + m - 1) // m * m


def _make_kernel(phase_taps, n_phase, n_rows, tm):
    """phase_taps: static python list (per phase) of (weight_entry_idx, flat_offset)."""

    def kernel(w_ref, b_ref, x0_ref, x1_ref, o_ref, xcat_ref):
        # Stitch the two consecutive TM-wide input windows (static, aligned stores).
        xcat_ref[:, :tm] = x0_ref[0]
        xcat_ref[:, tm:] = x1_ref[0]
        for ph in range(n_phase):                       # static loop over phases
            acc = jnp.zeros((n_rows, tm), jnp.float32)
            for (e, off) in phase_taps[ph]:             # static loop over taps
                acc = acc + jnp.dot(
                    w_ref[e],                           # (2*C_out, C2p)
                    xcat_ref[:, off:off + tm],          # static (unaligned) slice
                    preferred_element_type=jnp.float32)
            # biases (f32) added once on the f32 accumulator, then cast to out dtype
            o_ref[0, ph] = (acc + b_ref[...]).astype(o_ref.dtype)

    return kernel


def cconv_transpose2d(x, w_real, w_im, b_real, b_im, *,
                      stride, padding=0, output_padding=0,
                      compute_dtype=jnp.bfloat16, out_dtype=None,
                      tm_target=2048):
    """Forward pass of CConvTranspose2d.

    x:      (B, C_in, H, W, 2) float32   (last axis: real/imag)
    w_*:    (C_in, C_out, kH, kW)        (PyTorch ConvTranspose2d weight layout)
    b_*:    (C_out,)
    compute_dtype: matmul operand dtype (bf16 default: kernel is HBM-bound, so this
                   ~halves traffic on v5e/v6e/v7x; accumulation stays f32).
    out_dtype: dtype of the kernel output (default: x.dtype).
    returns (B, C_out, H_out, W_out, 2)
    """
    B, C_in, H, W, two = x.shape
    assert two == 2
    C_in_w, C_out, kH, kW = w_real.shape
    assert C_in_w == C_in
    sH, sW = _pair(stride)
    pH, pW = _pair(padding)
    opH, opW = _pair(output_padding)
    out_dtype = x.dtype if out_dtype is None else out_dtype

    H_out = (H - 1) * sH - 2 * pH + kH + opH
    W_out = (W - 1) * sW - 2 * pW + kW + opW
    assert H_out > 0 and W_out > 0

    N = 2 * C_out                   # output rows: [real C_out | imag C_out]
    C2 = 2 * C_in                   # contraction: [real C_in | imag C_in]
    # dtype-aware sublane multiple for the contraction dim (8 f32 / 16 bf16)
    sub = 16 if jnp.dtype(compute_dtype).itemsize < 4 else 8
    C2p = _round_up(C2, sub)
    n_phase = sH * sW

    # ---- static phase / tap enumeration --------------------------------------
    # output row ho = qh*sH + rH receives tap kh iff kh ≡ (rH + pH) (mod sH), reading
    # input row i = qh + eh with eh = (rH + pH - kh) // sH.  Same along W.
    taps_rc = []                    # per phase: list of (kh, kw, eh, ew)
    for rH in range(sH):
        for rW in range(sW):
            t = []
            for kh in range(kH):
                if (rH + pH - kh) % sH:
                    continue
                eh = (rH + pH - kh) // sH
                for kw in range(kW):
                    if (rW + pW - kw) % sW:
                        continue
                    ew = (rW + pW - kw) // sW
                    t.append((kh, kw, eh, ew))
            taps_rc.append(t)
    all_t = [tt for t in taps_rc for tt in t]
    eh_vals = [tt[2] for tt in all_t] or [0]
    ew_vals = [tt[3] for tt in all_t] or [0]
    padL_h = max(0, -min(eh_vals))
    padL_w = max(0, -min(ew_vals))
    Hq = -(-H_out // sH)            # canvas rows per phase (ceil)
    Wq = -(-W_out // sW)            # meaningful canvas cols per phase
    Hp = max(padL_h + H, Hq + max(eh_vals) + padL_h)   # padded input height
    Wp = max(padL_w + W, Wq + max(ew_vals) + padL_w)   # padded input width = canvas width

    # Flat-shift trick: canvas position j = qh*Wp + qw reads flat input position
    # j + off, off = (eh + padL_h)*Wp + (ew + padL_w)  (static per phase/tap).
    phase_taps, w_entries = [], []
    for t in taps_rc:
        entries = []
        for (kh, kw, eh, ew) in t:
            off = (eh + padL_h) * Wp + (ew + padL_w)
            wr_t = w_real[:, :, kh, kw].T.astype(jnp.float32)   # (C_out, C_in)
            wi_t = w_im[:, :, kh, kw].T.astype(jnp.float32)
            w_e = jnp.concatenate([
                jnp.concatenate([wr_t, -wi_t], axis=1),         # real outputs
                jnp.concatenate([wi_t, wr_t], axis=1)], axis=0)  # imag outputs
            entries.append((len(w_entries), off))
            w_entries.append(w_e)
        phase_taps.append(entries)
    if not w_entries:               # degenerate safety (never hit for kH,kW >= 1)
        w_entries.append(jnp.zeros((N, C2), jnp.float32))
    E = len(w_entries)
    off_max = max([o for t in phase_taps for (_, o) in t] or [0])

    Mc = Hq * Wp                    # per-phase canvas length (junk cols qw >= Wq included)

    # ---- tile sizing: lane dim multiple of 128, >= off_max (two-view window),
    #      as large as the generation-aware VMEM budget allows --------------------
    lane = 128
    cd = jnp.dtype(compute_dtype).itemsize
    od = jnp.dtype(out_dtype).itemsize
    tm_min = max(lane, _round_up(max(off_max, 1), lane))
    try:
        vmem_phys = pltpu.get_tpu_info().vmem_capacity_bytes
    except Exception:
        vmem_phys = 64 << 20        # conservative fallback (v7x per-core VMEM)
    budget = min(vmem_phys // 2, 96 << 20)

    def _vmem_need(t):
        views = 2 * 2 * C2p * t * cd          # two flat-input views, double-buffered
        stitch = C2p * 2 * t * cd             # stitch scratch
        outb = 2 * n_phase * N * t * od       # output block, double-buffered
        wres = 2 * E * N * C2p * cd + 2 * N * 4
        return views + stitch + outb + wres + (2 << 20)   # + compiler slack

    TM = _round_up(max(tm_min, min(tm_target, _round_up(Mc, lane))), lane)
    while TM > tm_min and _vmem_need(TM) > budget:
        TM = max(tm_min, _round_up(TM // 2, lane))
    # TODO(synk): if off_max ever exceeds the affordable TM (extremely wide inputs),
    # add a third input view instead of growing TM.

    Mc_pad = _round_up(Mc, TM)
    n_tiles = Mc_pad // TM
    # v7x has 2 TensorCores sharing the 'parallel' grid: prefer an even tile count.
    if (B * n_tiles) % 2 == 1:
        t2 = _round_up(-(-Mc // (n_tiles + 1)), lane)
        if t2 >= tm_min and (B * (-(-Mc // t2))) % 2 == 0 and _vmem_need(t2) <= budget:
            TM = t2
            Mc_pad = _round_up(Mc, TM)
            n_tiles = Mc_pad // TM
    L_pad = _round_up(max(Hp * Wp, Mc_pad + TM), TM)   # covers block m+1 and all shifts

    # ---- JAX-side prep (input-sized only: no dilation, no im2col) ---------------
    xcat = jnp.concatenate([x[..., 0], x[..., 1]], axis=1)          # (B, C2, H, W)
    xcat = jnp.pad(xcat, ((0, 0), (0, C2p - C2),
                          (padL_h, Hp - padL_h - H),
                          (padL_w, Wp - padL_w - W)))
    x_flat = xcat.reshape(B, C2p, Hp * Wp)
    x_flat = jnp.pad(x_flat, ((0, 0), (0, 0), (0, L_pad - Hp * Wp)))
    x_flat = x_flat.astype(compute_dtype)

    w_stack = jnp.stack(w_entries, axis=0)                          # (E, N, C2)
    w_stack = jnp.pad(w_stack, ((0, 0), (0, 0), (0, C2p - C2))).astype(compute_dtype)
    # biases stay f32 (added on the f32 accumulator; matches both ConvTranspose2d's)
    bias = jnp.concatenate([b_real - b_im, b_real + b_im]).reshape(N, 1).astype(jnp.float32)

    kernel = _make_kernel(phase_taps, n_phase, N, TM)

    out_t = pl.pallas_call(
        kernel,
        out_shape=jax.ShapeDtypeStruct((B, n_phase, N, Mc_pad), out_dtype),
        grid_spec=pltpu.PrefetchScalarGridSpec(
            num_scalar_prefetch=0,
            grid=(B, n_tiles),
            in_specs=[
                pl.BlockSpec((E, N, C2p), lambda b, m: (0, 0, 0)),       # fused weights (resident)
                pl.BlockSpec((N, 1), lambda b, m: (0, 0)),               # fused bias (resident, f32)
                pl.BlockSpec((1, C2p, TM), lambda b, m: (b, 0, m)),      # flat input, window m
                pl.BlockSpec((1, C2p, TM), lambda b, m: (b, 0, m + 1)),  # flat input, window m+1
            ],
            out_specs=pl.BlockSpec((1, n_phase, N, TM), lambda b, m: (b, 0, 0, m)),
            scratch_shapes=[pltpu.VMEM((C2p, 2 * TM), compute_dtype)],
        ),
        compiler_params=pltpu.CompilerParams(
            dimension_semantics=("parallel", "parallel"),
            vmem_limit_bytes=int(max(budget, _vmem_need(TM)))),
    )(w_stack, bias, x_flat, x_flat)

    # ---- sub-pixel de-interleave: one XLA transpose over output-sized data ------
    canvas = out_t[:, :, :, :Mc].reshape(B, sH, sW, 2, C_out, Hq, Wp)[..., :Wq]
    y = canvas.transpose(0, 4, 5, 1, 6, 2, 3)        # (B, C_out, Hq, sH, Wq, sW, 2)
    y = y.reshape(B, C_out, Hq * sH, Wq * sW, 2)
    return y[:, :, :H_out, :W_out, :]


def _ref_conv_transpose2d(x, w, b, stride, padding, output_padding):
    # Plain-JAX reference for one real-valued ConvTranspose2d (PyTorch semantics).
    sH, sW = _pair(stride)
    pH, pW = _pair(padding)
    opH, opW = _pair(output_padding)
    kH, kW = w.shape[2], w.shape[3]
    w_oihw = jnp.transpose(jnp.flip(w, axis=(2, 3)), (1, 0, 2, 3))
    y = lax.conv_general_dilated(
        x, w_oihw, window_strides=(1, 1),
        padding=[(kH - 1 - pH, kH - 1 - pH + opH),
                 (kW - 1 - pW, kW - 1 - pW + opW)],
        lhs_dilation=(sH, sW),
        dimension_numbers=('NCHW', 'OIHW', 'NCHW'),
        precision=lax.Precision.HIGHEST)
    return y + b.reshape(1, -1, 1, 1)


if __name__ == "__main__":
    B, C_in, C_out = 2, 4, 4
    H = W = 16
    kernel_size, stride, padding, output_padding = 3, 2, 1, 1
    kH = kW = kernel_size

    key = jax.random.PRNGKey(0)
    kx, kwr, kwi, kbr, kbi = jax.random.split(key, 5)

    # input: (B, C_in, H, W, 2)  -- real/imag stacked on the last axis
    x = jax.random.normal(kx, (B, C_in, H, W, 2), dtype=jnp.float32)

    # Deterministic xavier_uniform-style init (ConvTranspose2d weight: (C_in, C_out, kH, kW))
    fan_in = C_out * kH * kW
    fan_out = C_in * kH * kW
    bound = math.sqrt(6.0 / (fan_in + fan_out))
    w_real = jax.random.uniform(kwr, (C_in, C_out, kH, kW), jnp.float32, -bound, bound)
    w_im = jax.random.uniform(kwi, (C_in, C_out, kH, kW), jnp.float32, -bound, bound)
    b_bound = 1.0 / math.sqrt(C_in * kH * kW)
    b_real = jax.random.uniform(kbr, (C_out,), jnp.float32, -b_bound, b_bound)
    b_im = jax.random.uniform(kbi, (C_out,), jnp.float32, -b_bound, b_bound)

    # Reference mirrors the PyTorch forward exactly.
    x_real, x_im = x[..., 0], x[..., 1]
    ct_real = (_ref_conv_transpose2d(x_real, w_real, b_real, stride, padding, output_padding)
               - _ref_conv_transpose2d(x_im, w_im, b_im, stride, padding, output_padding))
    ct_im = (_ref_conv_transpose2d(x_real, w_im, b_im, stride, padding, output_padding)
             + _ref_conv_transpose2d(x_im, w_real, b_real, stride, padding, output_padding))
    ref = jnp.stack([ct_real, ct_im], axis=-1)

    H_out = (H - 1) * stride - 2 * padding + kernel_size + output_padding
    W_out = (W - 1) * stride - 2 * padding + kernel_size + output_padding

    # f32-operand path (exact semantics).
    out_f32 = cconv_transpose2d(x, w_real, w_im, b_real, b_im,
                                stride=stride, padding=padding,
                                output_padding=output_padding,
                                compute_dtype=jnp.float32)
    out_f32 = jax.block_until_ready(out_f32)
    assert out_f32.shape == (B, C_out, H_out, W_out, 2), out_f32.shape
    assert jnp.allclose(out_f32, ref, rtol=1e-3, atol=1e-3), \
        float(jnp.max(jnp.abs(out_f32 - ref)))

    # Default path: bf16 operands (HBM-bound kernel -> ~2x less traffic), f32 accumulation.
    out_bf16 = cconv_transpose2d(x, w_real, w_im, b_real, b_im,
                                 stride=stride, padding=padding,
                                 output_padding=output_padding)
    out_bf16 = jax.block_until_ready(out_bf16)
    assert out_bf16.shape == (B, C_out, H_out, W_out, 2), out_bf16.shape
    assert jnp.allclose(out_bf16, ref, rtol=5e-2, atol=5e-2), \
        float(jnp.max(jnp.abs(out_bf16 - ref)))

    print("KERNEL_OK")
</pallas_src>

<mosaic_0001>
module attributes {stable_mosaic.version = 11 : i64} {
  func.func @kernel(%arg0: i32, %arg1: i32, %arg2: memref<9x8x8xf32, #tpu.memory_space<vmem>>, %arg3: memref<8x1xf32, #tpu.memory_space<vmem>>, %arg4: memref<1x8x384xf32, #tpu.memory_space<vmem>>, %arg5: memref<1x8x384xf32, #tpu.memory_space<vmem>>, %arg6: memref<1x4x8x384xf32, #tpu.memory_space<vmem>>, %arg7: memref<8x768xf32, #tpu.memory_space<vmem>>) attributes {dimension_semantics = [#tpu.dimension_semantics<parallel>, #tpu.dimension_semantics<parallel>], iteration_bounds = array<i64: 2, 1>, scalar_prefetch = 0 : i64, scratch_operands = 1 : i64, tpu.core_type = #tpu.core_type<tc>, window_params = [{pipeline_mode = #tpu.pipeline_mode<synchronous>, transform_indices = @transform_0, window_bounds = array<i64: 9, 8, 8>}, {pipeline_mode = #tpu.pipeline_mode<synchronous>, transform_indices = @transform_1, window_bounds = array<i64: 8, 1>}, {transform_indices = @transform_2, window_bounds = array<i64: 1, 8, 384>}, {transform_indices = @transform_3, window_bounds = array<i64: 1, 8, 384>}, {transform_indices = @transform_4, window_bounds = array<i64: 1, 4, 8, 384>}]} {
    %c0 = arith.constant 0 : index
    %c0_0 = arith.constant 0 : index
    %c0_1 = arith.constant 0 : index
    %0 = vector.load %arg4[%c0, %c0_0, %c0_1] : memref<1x8x384xf32, #tpu.memory_space<vmem>>, vector<1x8x384xf32>
    %1 = vector.shape_cast %0 : vector<1x8x384xf32> to vector<8x384xf32>
    %c0_2 = arith.constant 0 : index
    %c0_3 = arith.constant 0 : index
    %2 = vector.load %arg7[%c0_2, %c0_3] : memref<8x768xf32, #tpu.memory_space<vmem>>, vector<8x384xf32>
    tpu.vector_store %arg7[%c0_2, %c0_3], %1 {strides = array<i32>} : memref<8x768xf32, #tpu.memory_space<vmem>>, vector<8x384xf32>,
    %c0_4 = arith.constant 0 : index
    %c0_5 = arith.constant 0 : index
    %c0_6 = arith.constant 0 : index
    %3 = vector.load %arg5[%c0_4, %c0_5, %c0_6] : memref<1x8x384xf32, #tpu.memory_space<vmem>>, vector<1x8x384xf32>
    %4 = vector.shape_cast %3 : vector<1x8x384xf32> to vector<8x384xf32>
    %c0_7 = arith.constant 0 : index
    %c384 = arith.constant 384 : index
    %5 = vector.load %arg7[%c0_7, %c384] : memref<8x768xf32, #tpu.memory_space<vmem>>, vector<8x384xf32>
    tpu.vector_store %arg7[%c0_7, %c384], %4 {strides = array<i32>} : memref<8x768xf32, #tpu.memory_space<vmem>>, vector<8x384xf32>,
    %cst = arith.constant 0.000000e+00 : f32
    %6 = vector.broadcast %cst : f32 to vector<8x384xf32>
    %c0_8 = arith.constant 0 : index
    %c0_9 = arith.constant 0 : index
    %c0_10 = arith.constant 0 : index
    %7 = vector.load %arg2[%c0_8, %c0_9, %c0_10] : memref<9x8x8xf32, #tpu.memory_space<vmem>>, vector<1x8x8xf32>
    %8 = vector.shape_cast %7 : vector<1x8x8xf32> to vector<8x8xf32>
    %c0_11 = arith.constant 0 : index
    %c0_12 = arith.constant 0 : index
    %9 = vector.load %arg7[%c0_11, %c0_12] : memref<8x768xf32, #tpu.memory_space<vmem>>, vector<8x384xf32>
    %cst_13 = arith.constant dense<0.000000e+00> : vector<8x384xf32>
    %10 = tpu.matmul %8, %9, %cst_13 {dimension_numbers = #tpu.dot_dimension_numbers<[1], [0], [0], [1], [0, 0, 1, 1], [], []>} : vector<8x8xf32>, vector<8x384xf32>, vector<8x384xf32> -> vector<8x384xf32>
    %11 = arith.addf %6, %10 : vector<8x384xf32>
    %c0_14 = arith.constant 0 : index
    %c0_15 = arith.constant 0 : index
    %12 = vector.load %arg3[%c0_14, %c0_15] : memref<8x1xf32, #tpu.memory_space<vmem>>, vector<8x1xf32>
    %13 = vector.broadcast %12 : vector<8x1xf32> to vector<8x384xf32>
    %14 = arith.addf %11, %13 : vector<8x384xf32>
    %c0_16 = arith.constant 0 : index
    %c0_17 = arith.constant 0 : index
    %c0_18 = arith.constant 0 : index
    %c0_19 = arith.constant 0 : index
    %15 = vector.load %arg6[%c0_16, %c0_17, %c0_18, %c0_19] : memref<1x4x8x384xf32, #tpu.memory_space<vmem>>, vector<1x1x8x384xf32>
    %16 = vector.shape_cast %15 : vector<1x1x8x384xf32> to vector<8x384xf32>
    %17 = vector.shape_cast %14 : vector<8x384xf32> to vector<1x1x8x384xf32>
    tpu.vector_store %arg6[%c0_16, %c0_17, %c0_18, %c0_19], %17 {strides = array<i32>} : memref<1x4x8x384xf32, #tpu.memory_space<vmem>>, vector<1x1x8x384xf32>,
    %cst_20 = arith.constant 0.000000e+00 : f32
    %18 = vector.broadcast %cst_20 : f32 to vector<8x384xf32>
    %c1 = arith.constant 1 : index
    %c0_21 = arith.constant 0 : index
    %c0_22 = arith.constant 0 : index
    %19 = vector.load %arg2[%c1, %c0_21, %c0_22] : memref<9x8x8xf32, #tpu.memory_space<vmem>>, vector<1x8x8xf32>
    %20 = vector.shape_cast %19 : vector<1x8x8xf32> to vector<8x8xf32>
    %c0_23 = arith.constant 0 : index
    %c1_24 = arith.constant 1 : index
    %21 = vector.load %arg7[%c0_23, %c1_24] : memref<8x768xf32, #tpu.memory_space<vmem>>, vector<8x384xf32>
    %cst_25 = arith.constant dense<0.000000e+00> : vector<8x384xf32>
    %22 = tpu.matmul %20, %21, %cst_25 {dimension_numbers = #tpu.dot_dimension_numbers<[1], [0], [0], [1], [0, 0, 1, 1], [], []>} : vector<8x8xf32>, vector<8x384xf32>, vector<8x384xf32> -> vector<8x384xf32>
    %23 = arith.addf %18, %22 : vector<8x384xf32>
    %c2 = arith.constant 2 : index
    %c0_26 = arith.constant 0 : index
    %c0_27 = arith.constant 0 : index
    %24 = vector.load %arg2[%c2, %c0_26, %c0_27] : memref<9x8x8xf32, #tpu.memory_space<vmem>>, vector<1x8x8xf32>
    %25 = vector.shape_cast %24 : vector<1x8x8xf32> to vector<8x8xf32>
    %c0_28 = arith.constant 0 : index
    %c0_29 = arith.constant 0 : index
    %26 = vector.load %arg7[%c0_28, %c0_29] : memref<8x768xf32, #tpu.memory_space<vmem>>, vector<8x384xf32>
    %cst_30 = arith.constant dense<0.000000e+00> : vector<8x384xf32>
    %27 = tpu.matmul %25, %26, %cst_30 {dimension_numbers = #tpu.dot_dimension_numbers<[1], [0], [0], [1], [0, 0, 1, 1], [], []>} : vector<8x8xf32>, vector<8x384xf32>, vector<8x384xf32> -> vector<8x384xf32>
    %28 = arith.addf %23, %27 : vector<8x384xf32>
    %c0_31 = arith.constant 0 : index
    %c0_32 = arith.constant 0 : index
    %29 = vector.load %arg3[%c0_31, %c0_32] : memref<8x1xf32, #tpu.memory_space<vmem>>, vector<8x1xf32>
    %30 = vector.broadcast %29 : vector<8x1xf32> to vector<8x384xf32>
    %31 = arith.addf %28, %30 : vector<8x384xf32>
    %c0_33 = arith.constant 0 : index
    %c1_34 = arith.constant 1 : index
    %c0_35 = arith.constant 0 : index
    %c0_36 = arith.constant 0 : index
    %32 = vector.load %arg6[%c0_33, %c1_34, %c0_35, %c0_36] : memref<1x4x8x384xf32, #tpu.memory_space<vmem>>, vector<1x1x8x384xf32>
    %33 = vector.shape_cast %32 : vector<1x1x8x384xf32> to vector<8x384xf32>
    %34 = vector.shape_cast %31 : vector<8x384xf32> to vector<1x1x8x384xf32>
    tpu.vector_store %arg6[%c0_33, %c1_34, %c0_35, %c0_36], %34 {strides = array<i32>} : memref<1x4x8x384xf32, #tpu.memory_space<vmem>>, vector<1x1x8x384xf32>,
    %cst_37 = arith.constant 0.000000e+00 : f32
    %35 = vector.broadcast %cst_37 : f32 to vector<8x384xf32>
    %c3 = arith.constant 3 : index
    %c0_38 = arith.constant 0 : index
    %c0_39 = arith.constant 0 : index
    %36 = vector.load %arg2[%c3, %c0_38, %c0_39] : memref<9x8x8xf32, #tpu.memory_space<vmem>>, vector<1x8x8xf32>
    %37 = vector.shape_cast %36 : vector<1x8x8xf32> to vector<8x8xf32>
    %c0_40 = arith.constant 0 : index
    %c17 = arith.constant 17 : index
    %38 = vector.load %arg7[%c0_40, %c17] : memref<8x768xf32, #tpu.memory_space<vmem>>, vector<8x384xf32>
    %cst_41 = arith.constant dense<0.000000e+00> : vector<8x384xf32>
    %39 = tpu.matmul %37, %38, %cst_41 {dimension_numbers = #tpu.dot_dimension_numbers<[1], [0], [0], [1], [0, 0, 1, 1], [], []>} : vector<8x8xf32>, vector<8x384xf32>, vector<8x384xf32> -> vector<8x384xf32>
    %40 = arith.addf %35, %39 : vector<8x384xf32>
    %c4 = arith.constant 4 : index
    %c0_42 = arith.constant 0 : index
    %c0_43 = arith.constant 0 : index
    %41 = vector.load %arg2[%c4, %c0_42, %c0_43] : memref<9x8x8xf32, #tpu.memory_space<vmem>>, vector<1x8x8xf32>
    %42 = vector.shape_cast %41 : vector<1x8x8xf32> to vector<8x8xf32>
    %c0_44 = arith.constant 0 : index
    %c0_45 = arith.constant 0 : index
    %43 = vector.load %arg7[%c0_44, %c0_45] : memref<8x768xf32, #tpu.memory_space<vmem>>, vector<8x384xf32>
    %cst_46 = arith.constant dense<0.000000e+00> : vector<8x384xf32>
    %44 = tpu.matmul %42, %43, %cst_46 {dimension_numbers = #tpu.dot_dimension_numbers<[1], [0], [0], [1], [0, 0, 1, 1], [], []>} : vector<8x8xf32>, vector<8x384xf32>, vector<8x384xf32> -> vector<8x384xf32>
    %45 = arith.addf %40, %44 : vector<8x384xf32>
    %c0_47 = arith.constant 0 : index
    %c0_48 = arith.constant 0 : index
    %46 = vector.load %arg3[%c0_47, %c0_48] : memref<8x1xf32, #tpu.memory_space<vmem>>, vector<8x1xf32>
    %47 = vector.broadcast %46 : vector<8x1xf32> to vector<8x384xf32>
    %48 = arith.addf %45, %47 : vector<8x384xf32>
    %c0_49 = arith.constant 0 : index
    %c2_50 = arith.constant 2 : index
    %c0_51 = arith.constant 0 : index
    %c0_52 = arith.constant 0 : index
    %49 = vector.load %arg6[%c0_49, %c2_50, %c0_51, %c0_52] : memref<1x4x8x384xf32, #tpu.memory_space<vmem>>, vector<1x1x8x384xf32>
    %50 = vector.shape_cast %49 : vector<1x1x8x384xf32> to vector<8x384xf32>
    %51 = vector.shape_cast %48 : vector<8x384xf32> to vector<1x1x8x384xf32>
    tpu.vector_store %arg6[%c0_49, %c2_50, %c0_51, %c0_52], %51 {strides = array<i32>} : memref<1x4x8x384xf32, #tpu.memory_space<vmem>>, vector<1x1x8x384xf32>,
    %cst_53 = arith.constant 0.000000e+00 : f32
    %52 = vector.broadcast %cst_53 : f32 to vector<8x384xf32>
    %c5 = arith.constant 5 : index
    %c0_54 = arith.constant 0 : index
    %c0_55 = arith.constant 0 : index
    %53 = vector.load %arg2[%c5, %c0_54, %c0_55] : memref<9x8x8xf32, #tpu.memory_space<vmem>>, vector<1x8x8xf32>
    %54 = vector.shape_cast %53 : vector<1x8x8xf32> to vector<8x8xf32>
    %c0_56 = arith.constant 0 : index
    %c18 = arith.constant 18 : index
    %55 = vector.load %arg7[%c0_56, %c18] : memref<8x768xf32, #tpu.memory_space<vmem>>, vector<8x384xf32>
    %cst_57 = arith.constant dense<0.000000e+00> : vector<8x384xf32>
    %56 = tpu.matmul %54, %55, %cst_57 {dimension_numbers = #tpu.dot_dimension_numbers<[1], [0], [0], [1], [0, 0, 1, 1], [], []>} : vector<8x8xf32>, vector<8x384xf32>, vector<8x384xf32> -> vector<8x384xf32>
    %57 = arith.addf %52, %56 : vector<8x384xf32>
    %c6 = arith.constant 6 : index
    %c0_58 = arith.constant 0 : index
    %c0_59 = arith.constant 0 : index
    %58 = vector.load %arg2[%c6, %c0_58, %c0_59] : memref<9x8x8xf32, #tpu.memory_space<vmem>>, vector<1x8x8xf32>
    %59 = vector.shape_cast %58 : vector<1x8x8xf32> to vector<8x8xf32>
    %c0_60 = arith.constant 0 : index
    %c17_61 = arith.constant 17 : index
    %60 = vector.load %arg7[%c0_60, %c17_61] : memref<8x768xf32, #tpu.memory_space<vmem>>, vector<8x384xf32>
    %cst_62 = arith.constant dense<0.000000e+00> : vector<8x384xf32>
    %61 = tpu.matmul %59, %60, %cst_62 {dimension_numbers = #tpu.dot_dimension_numbers<[1], [0], [0], [1], [0, 0, 1, 1], [], []>} : vector<8x8xf32>, vector<8x384xf32>, vector<8x384xf32> -> vector<8x384xf32>
    %62 = arith.addf %57, %61 : vector<8x384xf32>
    %c7 = arith.constant 7 : index
    %c0_63 = arith.constant 0 : index
    %c0_64 = arith.constant 0 : index
    %63 = vector.load %arg2[%c7, %c0_63, %c0_64] : memref<9x8x8xf32, #tpu.memory_space<vmem>>, vector<1x8x8xf32>
    %64 = vector.shape_cast %63 : vector<1x8x8xf32> to vector<8x8xf32>
    %c0_65 = arith.constant 0 : index
    %c1_66 = arith.constant 1 : index
    %65 = vector.load %arg7[%c0_65, %c1_66] : memref<8x768xf32, #tpu.memory_space<vmem>>, vector<8x384xf32>
    %cst_67 = arith.constant dense<0.000000e+00> : vector<8x384xf32>
    %66 = tpu.matmul %64, %65, %cst_67 {dimension_numbers = #tpu.dot_dimension_numbers<[1], [0], [0], [1], [0, 0, 1, 1], [], []>} : vector<8x8xf32>, vector<8x384xf32>, vector<8x384xf32> -> vector<8x384xf32>
    %67 = arith.addf %62, %66 : vector<8x384xf32>
    %c8 = arith.constant 8 : index
    %c0_68 = arith.constant 0 : index
    %c0_69 = arith.constant 0 : index
    %68 = vector.load %arg2[%c8, %c0_68, %c0_69] : memref<9x8x8xf32, #tpu.memory_space<vmem>>, vector<1x8x8xf32>
    %69 = vector.shape_cast %68 : vector<1x8x8xf32> to vector<8x8xf32>
    %c0_70 = arith.constant 0 : index
    %c0_71 = arith.constant 0 : index
    %70 = vector.load %arg7[%c0_70, %c0_71] : memref<8x768xf32, #tpu.memory_space<vmem>>, vector<8x384xf32>
    %cst_72 = arith.constant dense<0.000000e+00> : vector<8x384xf32>
    %71 = tpu.matmul %69, %70, %cst_72 {dimension_numbers = #tpu.dot_dimension_numbers<[1], [0], [0], [1], [0, 0, 1, 1], [], []>} : vector<8x8xf32>, vector<8x384xf32>, vector<8x384xf32> -> vector<8x384xf32>
    %72 = arith.addf %67, %71 : vector<8x384xf32>
    %c0_73 = arith.constant 0 : index
    %c0_74 = arith.constant 0 : index
    %73 = vector.load %arg3[%c0_73, %c0_74] : memref<8x1xf32, #tpu.memory_space<vmem>>, vector<8x1xf32>
    %74 = vector.broadcast %73 : vector<8x1xf32> to vector<8x384xf32>
    %75 = arith.addf %72, %74 : vector<8x384xf32>
    %c0_75 = arith.constant 0 : index
    %c3_76 = arith.constant 3 : index
    %c0_77 = arith.constant 0 : index
    %c0_78 = arith.constant 0 : index
    %76 = vector.load %arg6[%c0_75, %c3_76, %c0_77, %c0_78] : memref<1x4x8x384xf32, #tpu.memory_space<vmem>>, vector<1x1x8x384xf32>
    %77 = vector.shape_cast %76 : vector<1x1x8x384xf32> to vector<8x384xf32>
    %78 = vector.shape_cast %75 : vector<8x384xf32> to vector<1x1x8x384xf32>
    tpu.vector_store %arg6[%c0_75, %c3_76, %c0_77, %c0_78], %78 {strides = array<i32>} : memref<1x4x8x384xf32, #tpu.memory_space<vmem>>, vector<1x1x8x384xf32>,
    return
  }
  func.func @transform_0(%arg0: i32, %arg1: i32) -> (i32, i32, i32) {
    %c0_i32 = arith.constant 0 : i32
    %c0_i32_0 = arith.constant 0 : i32
    %c0_i32_1 = arith.constant 0 : i32
    %c0_i32_2 = arith.constant 0 : i32
    return %c0_i32, %c0_i32_0, %c0_i32_1 : i32, i32, i32
  }
  func.func @transform_1(%arg0: i32, %arg1: i32) -> (i32, i32) {
    %c0_i32 = arith.constant 0 : i32
    %c0_i32_0 = arith.constant 0 : i32
    %c0_i32_1 = arith.constant 0 : i32
    return %c0_i32, %c0_i32_0 : i32, i32
  }
  func.func @transform_2(%arg0: i32, %arg1: i32) -> (i32, i32, i32) {
    %c0_i32 = arith.constant 0 : i32
    %c0_i32_0 = arith.constant 0 : i32
    return %arg0, %c0_i32, %arg1 : i32, i32, i32
  }
  func.func @transform_3(%arg0: i32, %arg1: i32) -> (i32, i32, i32) {
    %c1_i32 = arith.constant 1 : i32
    %0 = arith.addi %arg1, %c1_i32 : i32
    %c0_i32 = arith.constant 0 : i32
    %c0_i32_0 = arith.constant 0 : i32
    return %arg0, %c0_i32, %0 : i32, i32, i32
  }
  func.func @transform_4(%arg0: i32, %arg1: i32) -> (i32, i32, i32, i32) {
    %c0_i32 = arith.constant 0 : i32
    %c0_i32_0 = arith.constant 0 : i32
    %c0_i32_1 = arith.constant 0 : i32
    return %arg0, %c0_i32, %c0_i32_0, %arg1 : i32, i32, i32, i32
  }
}

</mosaic_0001>

<llo_original>
// kernel: tpu_custom_call.1
$region0: #{tpu_custom_call.1}
  #allocation0 [shape = 'u32[]', space=smem, size = 0x4, offset = 0x4, fixed_abs, tag = 'smem constant byte address 0x4 - core index']
  #allocation1 [shape = 'u32[72,128]{1,0:T(1,128)}', space=vmem, size = 0x9000, scoped, tag = 'internal scratch']
  #allocation2 [shape = 'f32[8,768]{1,0:T(8,128)}', space=vmem, size = 0x6000, scoped, tag = 'scratch operand']
  %s0 = inlined_call_operand.vmem [shape: f32[9,8,8], index: 0, kind: input, shape index: {}]
  %s1 = inlined_call_operand.vmem [shape: f32[8,1], index: 1, kind: input, shape index: {}]
  %s2 = inlined_call_operand.vmem [shape: f32[2,8,768], index: 2, kind: input, shape index: {}]
  %s3 = inlined_call_operand.hbm [shape: f32[2,8,768], index: 3, kind: input, shape index: {}]
  %s4 = inlined_call_operand.hbm [shape: f32[2,4,8,384], index: 4, kind: output, shape index: {}]
  %s5 = sld [smem:[#allocation0]]
  $region53: #{tpu_custom_call.1} parent=0
    _
  %s7 = ssub.s32 1, %s5
  %s8 = scalar_select 0, %s7, %s5
  $region1: #{tpu_custom_call.1} parent=0
    #allocation3 [shape = 'u8[24576]{0}', space=vmem, size = 0x6000, scoped, tag = 'input window, operand 3']
    #allocation4 [shape = 's32[2]{0}', space=sflag, size = 0x8, scoped, tag = 'scoped memory for tpu_custom_call.1']
    #allocation5 [shape = 's32[2]{0}', space=sflag, size = 0x8, scoped, tag = 'scoped memory for tpu_custom_call.1']
    #allocation6 [shape = 'u8[98304]{0}', space=vmem, size = 0x18000, scoped, tag = 'output window, operand 0']
    %9 = vsyncpa [#allocation4], 0
    %s10 = scalar_lea.sflag [#allocation4], 1
    %11 = vsyncpa %s10, 0
    %12 = vsyncpa [#allocation5], 0
    %s13 = scalar_lea.sflag [#allocation5], 1
    %14 = vsyncpa %s13, 0
    loop: start=0, step=1, limit=4
    $region2: #{tpu_custom_call.1} parent=1 // loop_pre_header
      _
    $region3: #{tpu_custom_call.1} parent=1 // loop_header
      %s16 = sphi 0, %s20
      %p17 = scmp.ge.s32.totalorder %s16, 4
      %s23 = sphi 0, %s35
      %s24 = sphi 0, %s31
      %s25 = sphi 0, %s23
      %s26 = sphi 0, %s24
      %s27 = sphi 0, %s25
      %s28 = sphi 0, %s26
      %s36 = sphi 0, %s36
      %s38 = sphi 0, %s36
      %s39 = sphi 0, %s38
      %s53 = sphi 0, %s39
      %s57 = sphi 0, %s57
      %s59 = sphi 0, %s57
      %s60 = sphi 0, %s59
      %s74 = sphi 0, %s60
      %s82 = sphi 0, %s84
      %s85 = sphi 0, %s82
      %s86 = sphi 0, %s85
      %s102 = sphi 0, %s86
      %s112 = sphi 0, %s114
      %s115 = sphi 0, %s112
      %s116 = sphi 0, %s115
      %s132 = sphi 0, %s116
      %s140 = sphi 0, %s142
      %s143 = sphi 0, %s140
      %s144 = sphi 0, %s143
      %s160 = sphi 0, %s144
    $region4: #{tpu_custom_call.1} parent=1 // loop_header_branch
      %19 = sbr.rel (%p17) target = $region8
    $region5: #{tpu_custom_call.1} parent=1 // loop_body
      %s21 = ssub.s32 %s16, 1
      %s22 = ssub.s32 %s16, 2
      %s29 = sadd.s32 1, %s24
      %p30 = scmp.ge.s32.totalorder %s29, 1
      %s31 = scalar_select %p30, 0, %s29
      %s32 = sadd.s32 1, %s23
      %s33 = scalar_select %p30, %s32, %s23
      %p34 = scmp.ge.s32.totalorder %s33, 2
      %s35 = scalar_select %p34, 0, %s33
      %s37 = sadd.s32 %s36, 1
      %p40 = scmp.eq.s32.totalorder %s16, 1
      %p41 = scmp.ne.s32.totalorder %s36, %s38
      %p42 = scmp.eq.s32.totalorder %s16, 0
      %p43 = por %p41, %p42
      %p44 = scmp.ne.s32.totalorder %s36, %s38
      %p45 = scmp.eq.s32.totalorder %s21, 1
      %p46 = por %p44, %p45
      %p47 = scmp.ne.s32.totalorder %s38, %s39
      %p48 = scmp.eq.s32.totalorder %s21, 0
      %p49 = por %p47, %p48
      %p50 = scmp.ne.s32.totalorder %s38, %s39
      %p51 = scmp.eq.s32.totalorder %s22, 1
      %p52 = por %p50, %p51
      %p54 = scmp.ne.s32.totalorder %s39, %s53
      %p55 = scmp.eq.s32.totalorder %s22, 0
      %p56 = por %p54, %p55
      %s58 = sadd.s32 %s57, 1
      %p61 = scmp.eq.s32.totalorder %s16, 1
      %p62 = scmp.ne.s32.totalorder %s57, %s59
      %p63 = scmp.eq.s32.totalorder %s16, 0
      %p64 = por %p62, %p63
      %p65 = scmp.ne.s32.totalorder %s57, %s59
      %p66 = scmp.eq.s32.totalorder %s21, 1
      %p67 = por %p65, %p66
      %p68 = scmp.ne.s32.totalorder %s59, %s60
      %p69 = scmp.eq.s32.totalorder %s21, 0
      %p70 = por %p68, %p69
      %p71 = scmp.ne.s32.totalorder %s59, %s60
      %p72 = scmp.eq.s32.totalorder %s22, 1
      %p73 = por %p71, %p72
      %p75 = scmp.ne.s32.totalorder %s60, %s74
      %p76 = scmp.eq.s32.totalorder %s22, 0
      %p77 = por %p75, %p76
      %s78 = ssub.s32 %s23, %s35
      %s79 = ssub.s32 %s24, %s31
      %s80 = sor.u32 %s78, %s79
      %p81 = scmp.eq.s32.totalorder %s80, 0
      %s83 = sadd.s32 %s82, 1
      %s84 = scalar_select %p81, %s82, %s83
      %p87 = pneg %p81
      %p88 = scmp.eq.s32.totalorder %s16, 1
      %p89 = por %p87, %p88
      %p90 = scmp.ne.s32.totalorder %s82, %s85
      %p91 = scmp.eq.s32.totalorder %s16, 0
      %p92 = por %p90, %p91
      %p93 = scmp.ne.s32.totalorder %s82, %s85
      %p94 = scmp.eq.s32.totalorder %s21, 1
      %p95 = por %p93, %p94
      %p96 = scmp.ne.s32.totalorder %s85, %s86
      %p97 = scmp.eq.s32.totalorder %s21, 0
      %p98 = por %p96, %p97
      %p99 = scmp.ne.s32.totalorder %s85, %s86
      %p100 = scmp.eq.s32.totalorder %s22, 1
      %p101 = por %p99, %p100
      %p103 = scmp.ne.s32.totalorder %s86, %s102
      %p104 = scmp.eq.s32.totalorder %s22, 0
      %p105 = por %p103, %p104
      %s106 = sadd.s32 %s24, 1
      %s107 = sadd.s32 %s31, 1
      %s108 = ssub.s32 %s23, %s35
      %s109 = ssub.s32 %s106, %s107
      %s110 = sor.u32 %s108, %s109
      %p111 = scmp.eq.s32.totalorder %s110, 0
      %s113 = sadd.s32 %s112, 1
      %s114 = scalar_select %p111, %s112, %s113
      %p117 = pneg %p111
      %p118 = scmp.eq.s32.totalorder %s16, 1
      %p119 = por %p117, %p118
      %p120 = scmp.ne.s32.totalorder %s112, %s115
      %p121 = scmp.eq.s32.totalorder %s16, 0
      %p122 = por %p120, %p121
      %p123 = scmp.ne.s32.totalorder %s112, %s115
      %p124 = scmp.eq.s32.totalorder %s21, 1
      %p125 = por %p123, %p124
      %p126 = scmp.ne.s32.totalorder %s115, %s116
      %p127 = scmp.eq.s32.totalorder %s21, 0
      %p128 = por %p126, %p127
      %p129 = scmp.ne.s32.totalorder %s115, %s116
      %p130 = scmp.eq.s32.totalorder %s22, 1
      %p131 = por %p129, %p130
      %p133 = scmp.ne.s32.totalorder %s116, %s132
      %p134 = scmp.eq.s32.totalorder %s22, 0
      %p135 = por %p133, %p134
      %s136 = ssub.s32 %s23, %s35
      %s137 = ssub.s32 %s24, %s31
      %s138 = sor.u32 %s136, %s137
      %p139 = scmp.eq.s32.totalorder %s138, 0
      %s141 = sadd.s32 %s140, 1
      %s142 = scalar_select %p139, %s140, %s141
      %p145 = pneg %p139
      %p146 = scmp.eq.s32.totalorder %s16, 1
      %p147 = por %p145, %p146
      %p148 = scmp.ne.s32.totalorder %s140, %s143
      %p149 = scmp.eq.s32.totalorder %s16, 0
      %p150 = por %p148, %p149
      %p151 = scmp.ne.s32.totalorder %s140, %s143
      %p152 = scmp.eq.s32.totalorder %s21, 1
      %p153 = por %p151, %p152
      %p154 = scmp.ne.s32.totalorder %s143, %s144
      %p155 = scmp.eq.s32.totalorder %s21, 0
      %p156 = por %p154, %p155
      %p157 = scmp.ne.s32.totalorder %s143, %s144
      %p158 = scmp.eq.s32.totalorder %s22, 1
      %p159 = por %p157, %p158
      %p161 = scmp.ne.s32.totalorder %s144, %s160
      %p162 = scmp.eq.s32.totalorder %s22, 0
      %p163 = por %p161, %p162
      %p164 = scmp.le.s32.totalorder 1, %s16
      %p165 = scmp.lt.s32.totalorder %s16, 3
      %p166 = pnand %p164, %p165
      %p167 = pneg %p166
      // Predicated region
      $region9: #{tpu_custom_call.1} parent=5 // pred_check
        _
      $region10: #{tpu_custom_call.1} parent=5 // pred_check_branch
        %169 = sbr.rel (%p166) target = $region12
      $region11: #{tpu_custom_call.1} parent=5 // pred_region
        %s170 = ssub.s32 %s16, 1
        // Predicated region
        $region13: #{tpu_custom_call.1} parent=11 // pred_check
          %p171 = pneg %p49
        $region14: #{tpu_custom_call.1} parent=11 // pred_check_branch
          %173 = sbr.rel (%p171) target = $region16
        $region15: #{tpu_custom_call.1} parent=11 // pred_region
          _
        $region16: #{tpu_custom_call.1} parent=11 // pred_fallthru
          _
        // Predicated region
        $region17: #{tpu_custom_call.1} parent=11 // pred_check
          %p174 = pneg %p70
        $region18: #{tpu_custom_call.1} parent=11 // pred_check_branch
          %176 = sbr.rel (%p174) target = $region20
        $region19: #{tpu_custom_call.1} parent=11 // pred_region
          _
        $region20: #{tpu_custom_call.1} parent=11 // pred_fallthru
          _
      $region12: #{tpu_custom_call.1} parent=5 // pred_fallthru
        _
      %p177 = scmp.lt.s32.totalorder %s16, 2
      // Predicated region
      $region21: #{tpu_custom_call.1} parent=5 // pred_check
        %p178 = pneg %p177
      $region22: #{tpu_custom_call.1} parent=5 // pred_check_branch
        %180 = sbr.rel (%p178) target = $region24
      $region23: #{tpu_custom_call.1} parent=5 // pred_region
        // Predicated region
        $region25: #{tpu_custom_call.1} parent=23 // pred_check
          %p181 = pneg %p92
        $region26: #{tpu_custom_call.1} parent=23 // pred_check_branch
          %183 = sbr.rel (%p181) target = $region28
        $region27: #{tpu_custom_call.1} parent=23 // pred_region
          %s184 = smul.u32 3, %s24
          %p185 = scmp.lt.s32.totalorder %s23, 1
          %s186 = scalar_select %p185, %s23, 1
          %p187 = scmp.lt.s32.totalorder %s184, 5
          %s188 = scalar_select %p187, %s184, 5
          %s189 = smul.addr %s186, 6
          %s190 = sadd.s32 %s188, %s189
          %s191 = smul.addr %s190, 8
          %s192 = scalar_lea.vmem %s2, %s191
          %s193 = smul.u32 3, %s24
        $region28: #{tpu_custom_call.1} parent=23 // pred_fallthru
          _
        // Predicated region
        $region29: #{tpu_custom_call.1} parent=23 // pred_check
          %p194 = pneg %p122
        $region30: #{tpu_custom_call.1} parent=23 // pred_check_branch
          %196 = sbr.rel (%p194) target = $region32
        $region31: #{tpu_custom_call.1} parent=23 // pred_region
          %s197 = sand.u32 %s112, 1
          %s198 = scalar_lea.sflag [#allocation4], %s197
          %s199 = sand.u32 %s112, 1
          %s200 = smul.addr %s199, 24
          %s201 = scalar_lea.vmem [#allocation3], %s200
          %s202 = sadd.s32 %s24, 1
          %s203 = smul.u32 3, %s202
          %205 = vsyncadd %s198, 0
          %s206 = smul.addr %s23, 6
          %s207 = sadd.s32 %s203, %s206
          %s208 = smul.addr %s207, 8
          %s209 = scalar_lea.hbm %s3, %s208
          %s211 = sshll.u32 %s209, 4
          %s212 = int_to_ptr.hbm [resolvable:$true] %s211
          %s213 = sshll.u32 %s201, 4
          %s214 = int_to_ptr.vmem [resolvable:$true] %s213
          %216 = dma.hbm_to_vmem [thread:$0]  %s212, 384, %s214, %s198
        $region32: #{tpu_custom_call.1} parent=23 // pred_fallthru
          _
      $region24: #{tpu_custom_call.1} parent=5 // pred_fallthru
        _
      %p217 = scmp.le.s32.totalorder 1, %s16
      %p218 = scmp.lt.s32.totalorder %s16, 3
      %p219 = pnand %p217, %p218
      %p220 = pneg %p219
      // Predicated region
      $region33: #{tpu_custom_call.1} parent=5 // pred_check
        _
      $region34: #{tpu_custom_call.1} parent=5 // pred_check_branch
        %222 = sbr.rel (%p219) target = $region36
      $region35: #{tpu_custom_call.1} parent=5 // pred_region
        %s223 = ssub.s32 %s16, 1
        %s224 = sand.u32 %s115, 1
        %s225 = scalar_lea.sflag [#allocation4], %s224
        %s226 = sand.u32 %s115, 1
        %s227 = smul.addr %s226, 24
        %s228 = scalar_lea.vmem [#allocation3], %s227
        // Predicated region
        $region37: #{tpu_custom_call.1} parent=35 // pred_check
          %p229 = pneg %p128
        $region38: #{tpu_custom_call.1} parent=35 // pred_check_branch
          %231 = sbr.rel (%p229) target = $region40
        $region39: #{tpu_custom_call.1} parent=35 // pred_region
          %233 = dma.done %s225, 384
        $region40: #{tpu_custom_call.1} parent=35 // pred_fallthru
          _
        %p234 = pneg %p49
        %p235 = pneg %p46
        %p236 = pneg %p70
        %p237 = pneg %p67
        %s238 = smul.u32 3, %s26
        %p239 = scmp.lt.s32.totalorder %s25, 1
        %s240 = scalar_select %p239, %s25, 1
        %p241 = scmp.lt.s32.totalorder %s238, 5
        %s242 = scalar_select %p241, %s238, 5
        %s243 = smul.addr %s240, 6
        %s244 = sadd.s32 %s242, %s243
        %s245 = smul.addr %s244, 8
        %s246 = scalar_lea.vmem %s2, %s245
        %p247 = pneg %p98
        %p248 = pneg %p95
        %s249 = sand.u32 %s115, 1
        %s250 = scalar_lea.sflag [#allocation4], %s249
        %s251 = sand.u32 %s115, 1
        %s252 = smul.addr %s251, 24
        %s253 = scalar_lea.vmem [#allocation3], %s252
        %p254 = pneg %p128
        %p255 = pneg %p125
        %p256 = pneg %p156
        %p257 = pneg %p153
        %s258 = sand.u32 %s143, 1
        %s259 = scalar_lea.sflag [#allocation5], %s258
        %s260 = sand.u32 %s143, 1
        %s261 = smul.addr %s260, 96
        %s262 = scalar_lea.vmem [#allocation6], %s261
        %s263 = smul.u32 3, %s26
        %p264 = scmp.lt.s32.totalorder %s25, 1
        %s265 = scalar_select %p264, %s25, 1
        %p266 = scmp.lt.s32.totalorder %s263, 5
        %s267 = scalar_select %p266, %s263, 5
        %s268 = smul.addr %s265, 6
        %s269 = sadd.s32 %s267, %s268
        %s270 = smul.addr %s269, 8
        %s271 = scalar_lea.vmem %s2, %s270
        %s272 = smul.u32 3, %s26
        %s273 = sadd.s32 %s26, 1
        %s274 = smul.u32 3, %s273
        %s275 = smul.u32 3, %s26
        %v276 = vld [vmem:[%s271] sm:$0xff]
        %v277 = vld [vmem:[%s271 + $0x8] sm:$0xff]
        %v278 = vld [vmem:[%s271 + $0x10] sm:$0xff]
        %279 = vst [vmem:[#allocation2] sm:$0xff] %v276
        %280 = vst [vmem:[#allocation2 + $0x8] sm:$0xff] %v277
        %281 = vst [vmem:[#allocation2 + $0x10] sm:$0xff] %v278
        %v282 = vld [vmem:[%s228] sm:$0xff]
        %v283 = vld [vmem:[%s228 + $0x8] sm:$0xff]
        %v284 = vld [vmem:[%s228 + $0x10] sm:$0xff]
        %285 = vst [vmem:[#allocation2 + $0x18] sm:$0xff] %v282
        %286 = vst [vmem:[#allocation2 + $0x20] sm:$0xff] %v283
        %287 = vst [vmem:[#allocation2 + $0x28] sm:$0xff] %v284
        %v288 = vld [vmem:[%s0] sm:$0xff]
        %v289 = vld [vmem:[#allocation2] sm:$0xff]
        %v290 = vld [vmem:[#allocation2 + $0x8] sm:$0xff]
        %v291 = vld [vmem:[#allocation2 + $0x10] sm:$0xff]
        %v292 = vld [vmem:[%s1] sm:$0xff]
        %294 = vset.pattern.permute.xlu0 0
        %295 = vperm.xlu0 %294, %v292
        %v296 = vpop.permute.xlu0 %295
        %vm298 = vcmask 64512
        %v300 = vsel %vm298, %v288, 0
        %302 = vmatpush.msra.mxu0 0.0
        %303 = vmatpush.msra.mxu0 0.0
        %304 = vmatpush.msra.mxu0 0.0
        %305 = vmatpush.msra.mxu0 0.0
        %306 = vmatpush.msra.mxu0 0.0
        %307 = vmatpush.msra.mxu0 0.0
        %308 = vmatpush.msra.mxu0 0.0
        %309 = vmatpush.msra.mxu0 0.0
        %310 = vmatpush.msra.mxu0 0.0
        %311 = vmatpush.msra.mxu0 0.0
        %312 = vmatpush.msra.mxu0 0.0
        %313 = vmatpush.msra.mxu0 0.0
        %314 = vmatpush.msra.mxu0 0.0
        %315 = vmatpush.msra.mxu0 0.0
        %316 = vmatpush.msra.mxu0 0.0
        %317 = vmatpush.msra.mxu0 %v289
        %318 = vmatmul.f32.gmra.mxu0 %v300
        %v319 = vpop.f32.mrf.mxu0
        %v320 = vadd.f32 %v296, %v319
        %321 = vdwg.mxu0
        %322 = vmatpush.msra.mxu0 0.0
        %323 = vmatpush.msra.mxu0 0.0
        %324 = vmatpush.msra.mxu0 0.0
        %325 = vmatpush.msra.mxu0 0.0
        %326 = vmatpush.msra.mxu0 0.0
        %327 = vmatpush.msra.mxu0 0.0
        %328 = vmatpush.msra.mxu0 0.0
        %329 = vmatpush.msra.mxu0 0.0
        %330 = vmatpush.msra.mxu0 0.0
        %331 = vmatpush.msra.mxu0 0.0
        %332 = vmatpush.msra.mxu0 0.0
        %333 = vmatpush.msra.mxu0 0.0
        %334 = vmatpush.msra.mxu0 0.0
        %335 = vmatpush.msra.mxu0 0.0
        %336 = vmatpush.msra.mxu0 0.0
        %337 = vmatpush.msra.mxu0 %v290
        %338 = vmatmul.f32.gmra.mxu0 %v300
        %v339 = vpop.f32.mrf.mxu0
        %v340 = vadd.f32 %v296, %v339
        %341 = vdwg.mxu0
        %342 = vmatpush.msra.mxu0 0.0
        %343 = vmatpush.msra.mxu0 0.0
        %344 = vmatpush.msra.mxu0 0.0
        %345 = vmatpush.msra.mxu0 0.0
        %346 = vmatpush.msra.mxu0 0.0
        %347 = vmatpush.msra.mxu0 0.0
        %348 = vmatpush.msra.mxu0 0.0
        %349 = vmatpush.msra.mxu0 0.0
        %350 = vmatpush.msra.mxu0 0.0
        %351 = vmatpush.msra.mxu0 0.0
        %352 = vmatpush.msra.mxu0 0.0
        %353 = vmatpush.msra.mxu0 0.0
        %354 = vmatpush.msra.mxu0 0.0
        %355 = vmatpush.msra.mxu0 0.0
        %356 = vmatpush.msra.mxu0 0.0
        %357 = vmatpush.msra.mxu0 %v291
        %358 = vmatmul.f32.gmra.mxu0 %v300
        %v359 = vpop.f32.mrf.mxu0
        %v360 = vadd.f32 %v296, %v359
        %361 = vdwg.mxu0
        %362 = vst [vmem:[%s262] sm:$0xff] %v320
        %363 = vst [vmem:[%s262 + $0x8] sm:$0xff] %v340
        %364 = vst [vmem:[%s262 + $0x10] sm:$0xff] %v360
        %s365 = scalar_lea.vmem %s0, 8
        %v366 = vld [vmem:[%s365] sm:$0xff]
        %v367 = vld [vmem:[#allocation2] sm:$0xff]
        %v368 = vld [vmem:[#allocation2 + $0x8] sm:$0xff]
        %v369 = vld [vmem:[#allocation2 + $0x10] sm:$0xff]
        %v370 = vld [vmem:[#allocation2 + $0x18] sm:$0xff]
        %s371 = scalar_lea.vmem %s0, 16
        %v372 = vld [vmem:[%s371] sm:$0xff]
        %v374 = vsel %vm298, %v372, 0
        %376 = vmatpush.msra.mxu0 0.0
        %377 = vmatpush.msra.mxu0 0.0
        %378 = vmatpush.msra.mxu0 0.0
        %379 = vmatpush.msra.mxu0 0.0
        %380 = vmatpush.msra.mxu0 0.0
        %381 = vmatpush.msra.mxu0 0.0
        %382 = vmatpush.msra.mxu0 0.0
        %383 = vmatpush.msra.mxu0 0.0
        %384 = vmatpush.msra.mxu0 0.0
        %385 = vmatpush.msra.mxu0 0.0
        %386 = vmatpush.msra.mxu0 0.0
        %387 = vmatpush.msra.mxu0 0.0
        %388 = vmatpush.msra.mxu0 0.0
        %389 = vmatpush.msra.mxu0 0.0
        %390 = vmatpush.msra.mxu0 0.0
        %391 = vmatpush.msra.mxu0 %v367
        %392 = vmatmul.f32.gmra.mxu0 %v374
        %v393 = vpop.f32.mrf.mxu0
        %v394 = vadd.f32 0.0, %v393
        %395 = vdwg.mxu0
        %396 = vmatpush.msra.mxu0 0.0
        %397 = vmatpush.msra.mxu0 0.0
        %398 = vmatpush.msra.mxu0 0.0
        %399 = vmatpush.msra.mxu0 0.0
        %400 = vmatpush.msra.mxu0 0.0
        %401 = vmatpush.msra.mxu0 0.0
        %402 = vmatpush.msra.mxu0 0.0
        %403 = vmatpush.msra.mxu0 0.0
        %404 = vmatpush.msra.mxu0 0.0
        %405 = vmatpush.msra.mxu0 0.0
        %406 = vmatpush.msra.mxu0 0.0
        %407 = vmatpush.msra.mxu0 0.0
        %408 = vmatpush.msra.mxu0 0.0
        %409 = vmatpush.msra.mxu0 0.0
        %410 = vmatpush.msra.mxu0 0.0
        %411 = vmatpush.msra.mxu0 %v368
        %412 = vmatmul.f32.gmra.mxu0 %v374
        %v413 = vpop.f32.mrf.mxu0
        %v414 = vadd.f32 0.0, %v413
        %415 = vdwg.mxu0
        %416 = vmatpush.msra.mxu0 0.0
        %417 = vmatpush.msra.mxu0 0.0
        %418 = vmatpush.msra.mxu0 0.0
        %419 = vmatpush.msra.mxu0 0.0
        %420 = vmatpush.msra.mxu0 0.0
        %421 = vmatpush.msra.mxu0 0.0
        %422 = vmatpush.msra.mxu0 0.0
        %423 = vmatpush.msra.mxu0 0.0
        %424 = vmatpush.msra.mxu0 0.0
        %425 = vmatpush.msra.mxu0 0.0
        %426 = vmatpush.msra.mxu0 0.0
        %427 = vmatpush.msra.mxu0 0.0
        %428 = vmatpush.msra.mxu0 0.0
        %429 = vmatpush.msra.mxu0 0.0
        %430 = vmatpush.msra.mxu0 0.0
        %431 = vmatpush.msra.mxu0 %v369
        %432 = vmatmul.f32.gmra.mxu0 %v374
        %v433 = vpop.f32.mrf.mxu0
        %v434 = vadd.f32 0.0, %v433
        %435 = vdwg.mxu0
        %440 = vrot.lane.b32.xlu0 %v367, 127
        %v441 = vpop.permute.xlu0 %440
        %442 = vrot.lane.b32.xlu0 %v368, 127
        %v443 = vpop.permute.xlu0 %442
        %444 = vrot.lane.b32.xlu0 %v369, 127
        %v445 = vpop.permute.xlu0 %444
        %446 = vrot.lane.b32.xlu0 %v370, 127
        %v447 = vpop.permute.xlu0 %446
        %vm448 = vcmask 1039360
        %v449 = vsel %vm448, %v441, %v443
        %v450 = vsel %vm448, %v443, %v445
        %v451 = vsel %vm448, %v445, %v447
        %v456 = vsel %vm298, %v366, 0
        %458 = vmatpush.msra.mxu0 0.0
        %459 = vmatpush.msra.mxu0 0.0
        %460 = vmatpush.msra.mxu0 0.0
        %461 = vmatpush.msra.mxu0 0.0
        %462 = vmatpush.msra.mxu0 0.0
        %463 = vmatpush.msra.mxu0 0.0
        %464 = vmatpush.msra.mxu0 0.0
        %465 = vmatpush.msra.mxu0 0.0
        %466 = vmatpush.msra.mxu0 0.0
        %467 = vmatpush.msra.mxu0 0.0
        %468 = vmatpush.msra.mxu0 0.0
        %469 = vmatpush.msra.mxu0 0.0
        %470 = vmatpush.msra.mxu0 0.0
        %471 = vmatpush.msra.mxu0 0.0
        %472 = vmatpush.msra.mxu0 0.0
        %473 = vmatpush.msra.mxu0 %v449
        %474 = vmatmul.f32.gmra.mxu0 %v456
        %v475 = vpop.f32.mrf.mxu0
        %v476 = vadd.f32 %v394, %v475
        %477 = vdwg.mxu0
        %478 = vmatpush.msra.mxu0 0.0
        %479 = vmatpush.msra.mxu0 0.0
        %480 = vmatpush.msra.mxu0 0.0
        %481 = vmatpush.msra.mxu0 0.0
        %482 = vmatpush.msra.mxu0 0.0
        %483 = vmatpush.msra.mxu0 0.0
        %484 = vmatpush.msra.mxu0 0.0
        %485 = vmatpush.msra.mxu0 0.0
        %486 = vmatpush.msra.mxu0 0.0
        %487 = vmatpush.msra.mxu0 0.0
        %488 = vmatpush.msra.mxu0 0.0
        %489 = vmatpush.msra.mxu0 0.0
        %490 = vmatpush.msra.mxu0 0.0
        %491 = vmatpush.msra.mxu0 0.0
        %492 = vmatpush.msra.mxu0 0.0
        %493 = vmatpush.msra.mxu0 %v450
        %494 = vmatmul.f32.gmra.mxu0 %v456
        %v495 = vpop.f32.mrf.mxu0
        %v496 = vadd.f32 %v414, %v495
        %497 = vdwg.mxu0
        %498 = vmatpush.msra.mxu0 0.0
        %499 = vmatpush.msra.mxu0 0.0
        %500 = vmatpush.msra.mxu0 0.0
        %501 = vmatpush.msra.mxu0 0.0
        %502 = vmatpush.msra.mxu0 0.0
        %503 = vmatpush.msra.mxu0 0.0
        %504 = vmatpush.msra.mxu0 0.0
        %505 = vmatpush.msra.mxu0 0.0
        %506 = vmatpush.msra.mxu0 0.0
        %507 = vmatpush.msra.mxu0 0.0
        %508 = vmatpush.msra.mxu0 0.0
        %509 = vmatpush.msra.mxu0 0.0
        %510 = vmatpush.msra.mxu0 0.0
        %511 = vmatpush.msra.mxu0 0.0
        %512 = vmatpush.msra.mxu0 0.0
        %513 = vmatpush.msra.mxu0 %v451
        %514 = vmatmul.f32.gmra.mxu0 %v456
        %v515 = vpop.f32.mrf.mxu0
        %v516 = vadd.f32 %v434, %v515
        %517 = vdwg.mxu0
        %v518 = vld [vmem:[%s1] sm:$0xff]
        %520 = vset.pattern.permute.xlu0 0
        %521 = vperm.xlu0 %520, %v518
        %v522 = vpop.permute.xlu0 %521
        %v524 = vadd.f32 %v476, %v522
        %v525 = vadd.f32 %v496, %v522
        %v526 = vadd.f32 %v516, %v522
        %s527 = scalar_lea.vmem %s262, 24 [#allocation6]
        %528 = vst [vmem:[%s527] sm:$0xff] %v524
        %529 = vst [vmem:[%s527 + $0x8] sm:$0xff] %v525
        %530 = vst [vmem:[%s527 + $0x10] sm:$0xff] %v526
        %s531 = scalar_lea.vmem %s0, 24
        %v532 = vld [vmem:[%s531] sm:$0xff]
        %v533 = vld [vmem:[#allocation2] sm:$0xff]
        %v534 = vld [vmem:[#allocation2 + $0x8] sm:$0xff]
        %v535 = vld [vmem:[#allocation2 + $0x10] sm:$0xff]
        %v536 = vld [vmem:[#allocation2 + $0x18] sm:$0xff]
        %s537 = scalar_lea.vmem %s0, 32
        %v538 = vld [vmem:[%s537] sm:$0xff]
        %v540 = vsel %vm298, %v538, 0
        %542 = vmatpush.msra.mxu0 0.0
        %543 = vmatpush.msra.mxu0 0.0
        %544 = vmatpush.msra.mxu0 0.0
        %545 = vmatpush.msra.mxu0 0.0
        %546 = vmatpush.msra.mxu0 0.0
        %547 = vmatpush.msra.mxu0 0.0
        %548 = vmatpush.msra.mxu0 0.0
        %549 = vmatpush.msra.mxu0 0.0
        %550 = vmatpush.msra.mxu0 0.0
        %551 = vmatpush.msra.mxu0 0.0
        %552 = vmatpush.msra.mxu0 0.0
        %553 = vmatpush.msra.mxu0 0.0
        %554 = vmatpush.msra.mxu0 0.0
        %555 = vmatpush.msra.mxu0 0.0
        %556 = vmatpush.msra.mxu0 0.0
        %557 = vmatpush.msra.mxu0 %v533
        %558 = vmatmul.f32.gmra.mxu0 %v540
        %v559 = vpop.f32.mrf.mxu0
        %v560 = vadd.f32 0.0, %v559
        %561 = vdwg.mxu0
        %562 = vmatpush.msra.mxu0 0.0
        %563 = vmatpush.msra.mxu0 0.0
        %564 = vmatpush.msra.mxu0 0.0
        %565 = vmatpush.msra.mxu0 0.0
        %566 = vmatpush.msra.mxu0 0.0
        %567 = vmatpush.msra.mxu0 0.0
        %568 = vmatpush.msra.mxu0 0.0
        %569 = vmatpush.msra.mxu0 0.0
        %570 = vmatpush.msra.mxu0 0.0
        %571 = vmatpush.msra.mxu0 0.0
        %572 = vmatpush.msra.mxu0 0.0
        %573 = vmatpush.msra.mxu0 0.0
        %574 = vmatpush.msra.mxu0 0.0
        %575 = vmatpush.msra.mxu0 0.0
        %576 = vmatpush.msra.mxu0 0.0
        %577 = vmatpush.msra.mxu0 %v534
        %578 = vmatmul.f32.gmra.mxu0 %v540
        %v579 = vpop.f32.mrf.mxu0
        %v580 = vadd.f32 0.0, %v579
        %581 = vdwg.mxu0
        %582 = vmatpush.msra.mxu0 0.0
        %583 = vmatpush.msra.mxu0 0.0
        %584 = vmatpush.msra.mxu0 0.0
        %585 = vmatpush.msra.mxu0 0.0
        %586 = vmatpush.msra.mxu0 0.0
        %587 = vmatpush.msra.mxu0 0.0
        %588 = vmatpush.msra.mxu0 0.0
        %589 = vmatpush.msra.mxu0 0.0
        %590 = vmatpush.msra.mxu0 0.0
        %591 = vmatpush.msra.mxu0 0.0
        %592 = vmatpush.msra.mxu0 0.0
        %593 = vmatpush.msra.mxu0 0.0
        %594 = vmatpush.msra.mxu0 0.0
        %595 = vmatpush.msra.mxu0 0.0
        %596 = vmatpush.msra.mxu0 0.0
        %597 = vmatpush.msra.mxu0 %v535
        %598 = vmatmul.f32.gmra.mxu0 %v540
        %v599 = vpop.f32.mrf.mxu0
        %v600 = vadd.f32 0.0, %v599
        %601 = vdwg.mxu0
        %606 = vrot.lane.b32.xlu0 %v533, 111
        %v607 = vpop.permute.xlu0 %606
        %608 = vrot.lane.b32.xlu0 %v534, 111
        %v609 = vpop.permute.xlu0 %608
        %610 = vrot.lane.b32.xlu0 %v535, 111
        %v611 = vpop.permute.xlu0 %610
        %612 = vrot.lane.b32.xlu0 %v536, 111
        %v613 = vpop.permute.xlu0 %612
        %vm614 = vcmask 908288
        %v615 = vsel %vm614, %v607, %v609
        %v616 = vsel %vm614, %v609, %v611
        %v617 = vsel %vm614, %v611, %v613
        %v622 = vsel %vm298, %v532, 0
        %624 = vmatpush.msra.mxu0 0.0
        %625 = vmatpush.msra.mxu0 0.0
        %626 = vmatpush.msra.mxu0 0.0
        %627 = vmatpush.msra.mxu0 0.0
        %628 = vmatpush.msra.mxu0 0.0
        %629 = vmatpush.msra.mxu0 0.0
        %630 = vmatpush.msra.mxu0 0.0
        %631 = vmatpush.msra.mxu0 0.0
        %632 = vmatpush.msra.mxu0 0.0
        %633 = vmatpush.msra.mxu0 0.0
        %634 = vmatpush.msra.mxu0 0.0
        %635 = vmatpush.msra.mxu0 0.0
        %636 = vmatpush.msra.mxu0 0.0
        %637 = vmatpush.msra.mxu0 0.0
        %638 = vmatpush.msra.mxu0 0.0
        %639 = vmatpush.msra.mxu0 %v615
        %640 = vmatmul.f32.gmra.mxu0 %v622
        %v641 = vpop.f32.mrf.mxu0
        %v642 = vadd.f32 %v560, %v641
        %643 = vdwg.mxu0
        %644 = vmatpush.msra.mxu0 0.0
        %645 = vmatpush.msra.mxu0 0.0
        %646 = vmatpush.msra.mxu0 0.0
        %647 = vmatpush.msra.mxu0 0.0
        %648 = vmatpush.msra.mxu0 0.0
        %649 = vmatpush.msra.mxu0 0.0
        %650 = vmatpush.msra.mxu0 0.0
        %651 = vmatpush.msra.mxu0 0.0
        %652 = vmatpush.msra.mxu0 0.0
        %653 = vmatpush.msra.mxu0 0.0
        %654 = vmatpush.msra.mxu0 0.0
        %655 = vmatpush.msra.mxu0 0.0
        %656 = vmatpush.msra.mxu0 0.0
        %657 = vmatpush.msra.mxu0 0.0
        %658 = vmatpush.msra.mxu0 0.0
        %659 = vmatpush.msra.mxu0 %v616
        %660 = vmatmul.f32.gmra.mxu0 %v622
        %v661 = vpop.f32.mrf.mxu0
        %v662 = vadd.f32 %v580, %v661
        %663 = vdwg.mxu0
        %664 = vmatpush.msra.mxu0 0.0
        %665 = vmatpush.msra.mxu0 0.0
        %666 = vmatpush.msra.mxu0 0.0
        %667 = vmatpush.msra.mxu0 0.0
        %668 = vmatpush.msra.mxu0 0.0
        %669 = vmatpush.msra.mxu0 0.0
        %670 = vmatpush.msra.mxu0 0.0
        %671 = vmatpush.msra.mxu0 0.0
        %672 = vmatpush.msra.mxu0 0.0
        %673 = vmatpush.msra.mxu0 0.0
        %674 = vmatpush.msra.mxu0 0.0
        %675 = vmatpush.msra.mxu0 0.0
        %676 = vmatpush.msra.mxu0 0.0
        %677 = vmatpush.msra.mxu0 0.0
        %678 = vmatpush.msra.mxu0 0.0
        %679 = vmatpush.msra.mxu0 %v617
        %680 = vmatmul.f32.gmra.mxu0 %v622
        %v681 = vpop.f32.mrf.mxu0
        %v682 = vadd.f32 %v600, %v681
        %683 = vdwg.mxu0
        %v684 = vld [vmem:[%s1] sm:$0xff]
        %686 = vset.pattern.permute.xlu0 0
        %687 = vperm.xlu0 %686, %v684
        %v688 = vpop.permute.xlu0 %687
        %v690 = vadd.f32 %v642, %v688
        %v691 = vadd.f32 %v662, %v688
        %v692 = vadd.f32 %v682, %v688
        %s693 = scalar_lea.vmem %s262, 48 [#allocation6]
        %694 = vst [vmem:[%s693] sm:$0xff] %v690
        %695 = vst [vmem:[%s693 + $0x8] sm:$0xff] %v691
        %696 = vst [vmem:[%s693 + $0x10] sm:$0xff] %v692
        %s697 = scalar_lea.vmem %s0, 40
        %v698 = vld [vmem:[%s697] sm:$0xff]
        %v699 = vld [vmem:[#allocation2] sm:$0xff]
        %v700 = vld [vmem:[#allocation2 + $0x8] sm:$0xff]
        %v701 = vld [vmem:[#allocation2 + $0x10] sm:$0xff]
        %v702 = vld [vmem:[#allocation2 + $0x18] sm:$0xff]
        %s703 = scalar_lea.vmem %s0, 48
        %v704 = vld [vmem:[%s703] sm:$0xff]
        %709 = vrot.lane.b32.xlu0 %v699, 111
        %v710 = vpop.permute.xlu0 %709
        %711 = vrot.lane.b32.xlu0 %v700, 111
        %v712 = vpop.permute.xlu0 %711
        %713 = vrot.lane.b32.xlu0 %v701, 111
        %v714 = vpop.permute.xlu0 %713
        %715 = vrot.lane.b32.xlu0 %v702, 111
        %v716 = vpop.permute.xlu0 %715
        %v717 = vsel %vm614, %v710, %v712
        %v718 = vsel %vm614, %v712, %v714
        %v719 = vsel %vm614, %v714, %v716
        %v724 = vsel %vm298, %v704, 0
        %726 = vmatpush.msra.mxu0 0.0
        %727 = vmatpush.msra.mxu0 0.0
        %728 = vmatpush.msra.mxu0 0.0
        %729 = vmatpush.msra.mxu0 0.0
        %730 = vmatpush.msra.mxu0 0.0
        %731 = vmatpush.msra.mxu0 0.0
        %732 = vmatpush.msra.mxu0 0.0
        %733 = vmatpush.msra.mxu0 0.0
        %734 = vmatpush.msra.mxu0 0.0
        %735 = vmatpush.msra.mxu0 0.0
        %736 = vmatpush.msra.mxu0 0.0
        %737 = vmatpush.msra.mxu0 0.0
        %738 = vmatpush.msra.mxu0 0.0
        %739 = vmatpush.msra.mxu0 0.0
        %740 = vmatpush.msra.mxu0 0.0
        %741 = vmatpush.msra.mxu0 %v717
        %742 = vmatmul.f32.gmra.mxu0 %v724
        %v743 = vpop.f32.mrf.mxu0
        %v744 = vadd.f32 0.0, %v743
        %745 = vdwg.mxu0
        %746 = vmatpush.msra.mxu0 0.0
        %747 = vmatpush.msra.mxu0 0.0
        %748 = vmatpush.msra.mxu0 0.0
        %749 = vmatpush.msra.mxu0 0.0
        %750 = vmatpush.msra.mxu0 0.0
        %751 = vmatpush.msra.mxu0 0.0
        %752 = vmatpush.msra.mxu0 0.0
        %753 = vmatpush.msra.mxu0 0.0
        %754 = vmatpush.msra.mxu0 0.0
        %755 = vmatpush.msra.mxu0 0.0
        %756 = vmatpush.msra.mxu0 0.0
        %757 = vmatpush.msra.mxu0 0.0
        %758 = vmatpush.msra.mxu0 0.0
        %759 = vmatpush.msra.mxu0 0.0
        %760 = vmatpush.msra.mxu0 0.0
        %761 = vmatpush.msra.mxu0 %v718
        %762 = vmatmul.f32.gmra.mxu0 %v724
        %v763 = vpop.f32.mrf.mxu0
        %v764 = vadd.f32 0.0, %v763
        %765 = vdwg.mxu0
        %766 = vmatpush.msra.mxu0 0.0
        %767 = vmatpush.msra.mxu0 0.0
        %768 = vmatpush.msra.mxu0 0.0
        %769 = vmatpush.msra.mxu0 0.0
        %770 = vmatpush.msra.mxu0 0.0
        %771 = vmatpush.msra.mxu0 0.0
        %772 = vmatpush.msra.mxu0 0.0
        %773 = vmatpush.msra.mxu0 0.0
        %774 = vmatpush.msra.mxu0 0.0
        %775 = vmatpush.msra.mxu0 0.0
        %776 = vmatpush.msra.mxu0 0.0
        %777 = vmatpush.msra.mxu0 0.0
        %778 = vmatpush.msra.mxu0 0.0
        %779 = vmatpush.msra.mxu0 0.0
        %780 = vmatpush.msra.mxu0 0.0
        %781 = vmatpush.msra.mxu0 %v719
        %782 = vmatmul.f32.gmra.mxu0 %v724
        %v783 = vpop.f32.mrf.mxu0
        %v784 = vadd.f32 0.0, %v783
        %785 = vdwg.mxu0
        %786 = vrot.lane.b32.xlu0 %v699, 110
        %v787 = vpop.permute.xlu0 %786
        %788 = vrot.lane.b32.xlu0 %v700, 110
        %v789 = vpop.permute.xlu0 %788
        %790 = vrot.lane.b32.xlu0 %v701, 110
        %v791 = vpop.permute.xlu0 %790
        %792 = vrot.lane.b32.xlu0 %v702, 110
        %v793 = vpop.permute.xlu0 %792
        %vm794 = vcmask 900096
        %v795 = vsel %vm794, %v787, %v789
        %v796 = vsel %vm794, %v789, %v791
        %v797 = vsel %vm794, %v791, %v793
        %v802 = vsel %vm298, %v698, 0
        %804 = vmatpush.msra.mxu0 0.0
        %805 = vmatpush.msra.mxu0 0.0
        %806 = vmatpush.msra.mxu0 0.0
        %807 = vmatpush.msra.mxu0 0.0
        %808 = vmatpush.msra.mxu0 0.0
        %809 = vmatpush.msra.mxu0 0.0
        %810 = vmatpush.msra.mxu0 0.0
        %811 = vmatpush.msra.mxu0 0.0
        %812 = vmatpush.msra.mxu0 0.0
        %813 = vmatpush.msra.mxu0 0.0
        %814 = vmatpush.msra.mxu0 0.0
        %815 = vmatpush.msra.mxu0 0.0
        %816 = vmatpush.msra.mxu0 0.0
        %817 = vmatpush.msra.mxu0 0.0
        %818 = vmatpush.msra.mxu0 0.0
        %819 = vmatpush.msra.mxu0 %v795
        %820 = vmatmul.f32.gmra.mxu0 %v802
        %v821 = vpop.f32.mrf.mxu0
        %v822 = vadd.f32 %v744, %v821
        %823 = vdwg.mxu0
        %824 = vmatpush.msra.mxu0 0.0
        %825 = vmatpush.msra.mxu0 0.0
        %826 = vmatpush.msra.mxu0 0.0
        %827 = vmatpush.msra.mxu0 0.0
        %828 = vmatpush.msra.mxu0 0.0
        %829 = vmatpush.msra.mxu0 0.0
        %830 = vmatpush.msra.mxu0 0.0
        %831 = vmatpush.msra.mxu0 0.0
        %832 = vmatpush.msra.mxu0 0.0
        %833 = vmatpush.msra.mxu0 0.0
        %834 = vmatpush.msra.mxu0 0.0
        %835 = vmatpush.msra.mxu0 0.0
        %836 = vmatpush.msra.mxu0 0.0
        %837 = vmatpush.msra.mxu0 0.0
        %838 = vmatpush.msra.mxu0 0.0
        %839 = vmatpush.msra.mxu0 %v796
        %840 = vmatmul.f32.gmra.mxu0 %v802
        %v841 = vpop.f32.mrf.mxu0
        %v842 = vadd.f32 %v764, %v841
        %843 = vdwg.mxu0
        %844 = vmatpush.msra.mxu0 0.0
        %845 = vmatpush.msra.mxu0 0.0
        %846 = vmatpush.msra.mxu0 0.0
        %847 = vmatpush.msra.mxu0 0.0
        %848 = vmatpush.msra.mxu0 0.0
        %849 = vmatpush.msra.mxu0 0.0
        %850 = vmatpush.msra.mxu0 0.0
        %851 = vmatpush.msra.mxu0 0.0
        %852 = vmatpush.msra.mxu0 0.0
        %853 = vmatpush.msra.mxu0 0.0
        %854 = vmatpush.msra.mxu0 0.0
        %855 = vmatpush.msra.mxu0 0.0
        %856 = vmatpush.msra.mxu0 0.0
        %857 = vmatpush.msra.mxu0 0.0
        %858 = vmatpush.msra.mxu0 0.0
        %859 = vmatpush.msra.mxu0 %v797
        %860 = vmatmul.f32.gmra.mxu0 %v802
        %v861 = vpop.f32.mrf.mxu0
        %v862 = vadd.f32 %v784, %v861
        %863 = vdwg.mxu0
        %s864 = scalar_lea.vmem %s0, 56
        %v865 = vld [vmem:[%s864] sm:$0xff]
        %866 = vrot.lane.b32.xlu0 %v699, 127
        %v867 = vpop.permute.xlu0 %866
        %868 = vrot.lane.b32.xlu0 %v700, 127
        %v869 = vpop.permute.xlu0 %868
        %870 = vrot.lane.b32.xlu0 %v701, 127
        %v871 = vpop.permute.xlu0 %870
        %872 = vrot.lane.b32.xlu0 %v702, 127
        %v873 = vpop.permute.xlu0 %872
        %v874 = vsel %vm448, %v867, %v869
        %v875 = vsel %vm448, %v869, %v871
        %v876 = vsel %vm448, %v871, %v873
        %v881 = vsel %vm298, %v865, 0
        %883 = vmatpush.msra.mxu0 0.0
        %884 = vmatpush.msra.mxu0 0.0
        %885 = vmatpush.msra.mxu0 0.0
        %886 = vmatpush.msra.mxu0 0.0
        %887 = vmatpush.msra.mxu0 0.0
        %888 = vmatpush.msra.mxu0 0.0
        %889 = vmatpush.msra.mxu0 0.0
        %890 = vmatpush.msra.mxu0 0.0
        %891 = vmatpush.msra.mxu0 0.0
        %892 = vmatpush.msra.mxu0 0.0
        %893 = vmatpush.msra.mxu0 0.0
        %894 = vmatpush.msra.mxu0 0.0
        %895 = vmatpush.msra.mxu0 0.0
        %896 = vmatpush.msra.mxu0 0.0
        %897 = vmatpush.msra.mxu0 0.0
        %898 = vmatpush.msra.mxu0 %v874
        %899 = vmatmul.f32.gmra.mxu0 %v881
        %v900 = vpop.f32.mrf.mxu0
        %v901 = vadd.f32 0.0, %v900
        %902 = vdwg.mxu0
        %903 = vmatpush.msra.mxu0 0.0
        %904 = vmatpush.msra.mxu0 0.0
        %905 = vmatpush.msra.mxu0 0.0
        %906 = vmatpush.msra.mxu0 0.0
        %907 = vmatpush.msra.mxu0 0.0
        %908 = vmatpush.msra.mxu0 0.0
        %909 = vmatpush.msra.mxu0 0.0
        %910 = vmatpush.msra.mxu0 0.0
        %911 = vmatpush.msra.mxu0 0.0
        %912 = vmatpush.msra.mxu0 0.0
        %913 = vmatpush.msra.mxu0 0.0
        %914 = vmatpush.msra.mxu0 0.0
        %915 = vmatpush.msra.mxu0 0.0
        %916 = vmatpush.msra.mxu0 0.0
        %917 = vmatpush.msra.mxu0 0.0
        %918 = vmatpush.msra.mxu0 %v875
        %919 = vmatmul.f32.gmra.mxu0 %v881
        %v920 = vpop.f32.mrf.mxu0
        %v921 = vadd.f32 0.0, %v920
        %922 = vdwg.mxu0
        %923 = vmatpush.msra.mxu0 0.0
        %924 = vmatpush.msra.mxu0 0.0
        %925 = vmatpush.msra.mxu0 0.0
        %926 = vmatpush.msra.mxu0 0.0
        %927 = vmatpush.msra.mxu0 0.0
        %928 = vmatpush.msra.mxu0 0.0
        %929 = vmatpush.msra.mxu0 0.0
        %930 = vmatpush.msra.mxu0 0.0
        %931 = vmatpush.msra.mxu0 0.0
        %932 = vmatpush.msra.mxu0 0.0
        %933 = vmatpush.msra.mxu0 0.0
        %934 = vmatpush.msra.mxu0 0.0
        %935 = vmatpush.msra.mxu0 0.0
        %936 = vmatpush.msra.mxu0 0.0
        %937 = vmatpush.msra.mxu0 0.0
        %938 = vmatpush.msra.mxu0 %v876
        %939 = vmatmul.f32.gmra.mxu0 %v881
        %v940 = vpop.f32.mrf.mxu0
        %v941 = vadd.f32 0.0, %v940
        %942 = vdwg.mxu0
        %v943 = vadd.f32 %v822, %v901
        %v944 = vadd.f32 %v842, %v921
        %v945 = vadd.f32 %v862, %v941
        %s946 = scalar_lea.vmem %s0, 64
        %v947 = vld [vmem:[%s946] sm:$0xff]
        %v948 = vld [vmem:[#allocation2] sm:$0xff]
        %v949 = vld [vmem:[#allocation2 + $0x8] sm:$0xff]
        %v950 = vld [vmem:[#allocation2 + $0x10] sm:$0xff]
        %v952 = vsel %vm298, %v947, 0
        %954 = vmatpush.msra.mxu0 0.0
        %955 = vmatpush.msra.mxu0 0.0
        %956 = vmatpush.msra.mxu0 0.0
        %957 = vmatpush.msra.mxu0 0.0
        %958 = vmatpush.msra.mxu0 0.0
        %959 = vmatpush.msra.mxu0 0.0
        %960 = vmatpush.msra.mxu0 0.0
        %961 = vmatpush.msra.mxu0 0.0
        %962 = vmatpush.msra.mxu0 0.0
        %963 = vmatpush.msra.mxu0 0.0
        %964 = vmatpush.msra.mxu0 0.0
        %965 = vmatpush.msra.mxu0 0.0
        %966 = vmatpush.msra.mxu0 0.0
        %967 = vmatpush.msra.mxu0 0.0
        %968 = vmatpush.msra.mxu0 0.0
        %969 = vmatpush.msra.mxu0 %v948
        %970 = vmatmul.f32.gmra.mxu0 %v952
        %v971 = vpop.f32.mrf.mxu0
        %v972 = vadd.f32 0.0, %v971
        %973 = vdwg.mxu0
        %974 = vmatpush.msra.mxu0 0.0
        %975 = vmatpush.msra.mxu0 0.0
        %976 = vmatpush.msra.mxu0 0.0
        %977 = vmatpush.msra.mxu0 0.0
        %978 = vmatpush.msra.mxu0 0.0
        %979 = vmatpush.msra.mxu0 0.0
        %980 = vmatpush.msra.mxu0 0.0
        %981 = vmatpush.msra.mxu0 0.0
        %982 = vmatpush.msra.mxu0 0.0
        %983 = vmatpush.msra.mxu0 0.0
        %984 = vmatpush.msra.mxu0 0.0
        %985 = vmatpush.msra.mxu0 0.0
        %986 = vmatpush.msra.mxu0 0.0
        %987 = vmatpush.msra.mxu0 0.0
        %988 = vmatpush.msra.mxu0 0.0
        %989 = vmatpush.msra.mxu0 %v949
        %990 = vmatmul.f32.gmra.mxu0 %v952
        %v991 = vpop.f32.mrf.mxu0
        %v992 = vadd.f32 0.0, %v991
        %993 = vdwg.mxu0
        %994 = vmatpush.msra.mxu0 0.0
        %995 = vmatpush.msra.mxu0 0.0
        %996 = vmatpush.msra.mxu0 0.0
        %997 = vmatpush.msra.mxu0 0.0
        %998 = vmatpush.msra.mxu0 0.0
        %999 = vmatpush.msra.mxu0 0.0
        %1000 = vmatpush.msra.mxu0 0.0
        %1001 = vmatpush.msra.mxu0 0.0
        %1002 = vmatpush.msra.mxu0 0.0
        %1003 = vmatpush.msra.mxu0 0.0
        %1004 = vmatpush.msra.mxu0 0.0
        %1005 = vmatpush.msra.mxu0 0.0
        %1006 = vmatpush.msra.mxu0 0.0
        %1007 = vmatpush.msra.mxu0 0.0
        %1008 = vmatpush.msra.mxu0 0.0
        %1009 = vmatpush.msra.mxu0 %v950
        %1010 = vmatmul.f32.gmra.mxu0 %v952
        %v1011 = vpop.f32.mrf.mxu0
        %v1012 = vadd.f32 0.0, %v1011
        %1013 = vdwg.mxu0
        %v1014 = vadd.f32 %v943, %v972
        %v1015 = vadd.f32 %v944, %v992
        %v1016 = vadd.f32 %v945, %v1012
        %v1017 = vld [vmem:[%s1] sm:$0xff]
        %1019 = vset.pattern.permute.xlu0 0
        %1020 = vperm.xlu0 %1019, %v1017
        %v1021 = vpop.permute.xlu0 %1020
        %v1023 = vadd.f32 %v1014, %v1021
        %v1024 = vadd.f32 %v1015, %v1021
        %v1025 = vadd.f32 %v1016, %v1021
        %s1026 = scalar_lea.vmem %s262, 72 [#allocation6]
        %1027 = vst [vmem:[%s1026] sm:$0xff] %v1023
        %1028 = vst [vmem:[%s1026 + $0x8] sm:$0xff] %v1024
        %1029 = vst [vmem:[%s1026 + $0x10] sm:$0xff] %v1025
        %s1030 = sand.u32 %s143, 1
        %s1031 = scalar_lea.sflag [#allocation5], %s1030
        %s1032 = sand.u32 %s143, 1
        %s1033 = smul.addr %s1032, 96
        %s1034 = scalar_lea.vmem [#allocation6], %s1033
        // Predicated region
        $region41: #{tpu_custom_call.1} parent=35 // pred_check
          %p1035 = pneg %p153
        $region42: #{tpu_custom_call.1} parent=35 // pred_check_branch
          %1037 = sbr.rel (%p1035) target = $region44
        $region43: #{tpu_custom_call.1} parent=35 // pred_region
          %s1038 = smul.u32 3, %s26
          %1040 = vsyncadd %s1031, 0
          %s1041 = smul.addr %s25, 12
          %s1042 = sadd.s32 %s1038, %s1041
          %s1043 = smul.addr %s1042, 8
          %s1044 = scalar_lea.hbm %s4, %s1043
          %s1045 = sshll.u32 %s1034, 4
          %s1046 = int_to_ptr.vmem [resolvable:$true] %s1045
          %s1047 = sshll.u32 %s1044, 4
          %s1048 = int_to_ptr.hbm [resolvable:$true] %s1047
          %1053 = dma.vmem_to_hbm [thread:$0]  %s1046, 1536, %s1048, %s1031, 384, 384, 24
        $region44: #{tpu_custom_call.1} parent=35 // pred_fallthru
          _
      $region36: #{tpu_custom_call.1} parent=5 // pred_fallthru
        _
      %p1054 = scmp.le.s32.totalorder 2, %s16
      // Predicated region
      $region45: #{tpu_custom_call.1} parent=5 // pred_check
        %p1055 = pneg %p1054
      $region46: #{tpu_custom_call.1} parent=5 // pred_check_branch
        %1057 = sbr.rel (%p1055) target = $region48
      $region47: #{tpu_custom_call.1} parent=5 // pred_region
        %s1058 = ssub.s32 %s16, 2
        // Predicated region
        $region49: #{tpu_custom_call.1} parent=47 // pred_check
          %p1059 = pneg %p159
        $region50: #{tpu_custom_call.1} parent=47 // pred_check_branch
          %1061 = sbr.rel (%p1059) target = $region52
        $region51: #{tpu_custom_call.1} parent=47 // pred_region
          %s1062 = sand.u32 %s144, 1
          %s1063 = scalar_lea.sflag [#allocation5], %s1062
          %s1064 = sand.u32 %s144, 1
          %s1065 = smul.addr %s1064, 96
          %s1066 = scalar_lea.vmem [#allocation6], %s1065
          %1068 = dma.done %s1063, 1536
        $region52: #{tpu_custom_call.1} parent=47 // pred_fallthru
          _
      $region48: #{tpu_custom_call.1} parent=5 // pred_fallthru
        _
    $region6: #{tpu_custom_call.1} parent=1 // loop_footer
      %s20 = sadd.s32 1, %s16
    $region7: #{tpu_custom_call.1} parent=1 // loop_footer_branch
      %15 = sbr.rel target = $region3
    $region8: #{tpu_custom_call.1} parent=1 // loop_exit
      _
    %1069 = vsyncpa [#allocation4], 1
    %s1070 = scalar_lea.sflag [#allocation4], 1
    %1071 = vsyncpa %s1070, 1
    %1072 = vsyncpa [#allocation5], 1
    %s1073 = scalar_lea.sflag [#allocation5], 1
    %1074 = vsyncpa %s1073, 1

</llo_original>
